<compile_context>
chip_gen: v7x
topology: tpu7x:2x2x1
jax: 0.10.0
libtpu: 0.0.40
codegen_flags: <defaults>
</compile_context>

<pallas_src>
import functools

import numpy as np
import jax
import jax.numpy as jnp
from jax.experimental import pallas as pl
from jax.experimental.pallas import tpu as pltpu


# ----------------------------- Pallas kernel --------------------------------
def _patch_embed_kernel(patches_ref, w_ref, pos_ref, out_ref):
    # One (hidden-tile, batch-block) grid step.
    #   patches_ref: (bb, T, K)  im2col'd patches; token-0 row is all-zero
    #   w_ref:       (K, tn)     projection-weight tile (resident across batch)
    #   pos_ref:     (T, tn)     row 0 = cls + pos[0]; rows 1.. = pos[1:] + conv bias
    #   out_ref:     (bb, T, tn) output tile (token 0 = cls)
    bb = patches_ref.shape[0]
    w = w_ref[...]
    pos = pos_ref[...].astype(jnp.float32)
    for b in range(bb):                                   # bb is small & static
        acc = jnp.dot(patches_ref[b], w,
                      preferred_element_type=jnp.float32)  # MXU
        out_ref[b] = (acc + pos).astype(out_ref.dtype)      # VPU add + aligned full store


# ------------------------------ tile planning --------------------------------
def _plan_tiles(B, T, K, hidden, in_b, w_b, pos_b, out_b,
                budget=48 * 1024 * 1024):
    """Pick (tn, bb, vmem_need_bytes) under an explicit VMEM budget.

    tn preference: full hidden (keeps weight/pos fully resident), then
    512/256/128 multiples (v6e/v7x MXU is 2x256^2 -> avoid 384).
    bb: as many batch elements per step as the budget allows (amortize the
    ~0.35 us per-grid-step overhead), capped at 8."""
    if hidden % 128 == 0:
        tn_candidates = [hidden] + [t for t in (512, 256, 128) if hidden % t == 0]
    else:
        tn_candidates = [hidden]

    def need_bytes(tn, bb):
        resident = K * tn * w_b + T * tn * pos_b
        streamed = bb * T * K * in_b + bb * T * tn * out_b
        # every BlockSpec input/output is double-buffered by the pipeline
        return 2 * (resident + streamed)

    for tn in tn_candidates:
        for bb in (8, 4, 2, 1):
            if B % bb:
                continue
            if need_bytes(tn, bb) <= budget:
                n_tiles = hidden // tn
                # keep >= 2 grid blocks when possible so both v7x TCs get work
                while n_tiles * (B // bb) < 2 and bb > 1:
                    bb //= 2
                return tn, bb, need_bytes(tn, bb)
    tn = tn_candidates[-1]
    return tn, 1, need_bytes(tn, 1)


def patch_embed_pallas(patches, w_mat, pos_full, *, out_dtype):
    """patches: (B, T, K) with a zero row at token 0; w_mat: (K, H);
    pos_full: (T, H) with cls/bias folded.  Returns (B, T, H)."""
    B, T, K = patches.shape
    hidden = w_mat.shape[1]

    tn, bb, need = _plan_tiles(
        B, T, K, hidden,
        np.dtype(patches.dtype).itemsize, np.dtype(w_mat.dtype).itemsize,
        np.dtype(pos_full.dtype).itemsize, np.dtype(out_dtype).itemsize)
    n_tiles = hidden // tn
    n_bblocks = B // bb
    vmem_limit = int(max(need + (2 << 20), 16 << 20))   # explicit 2x already in `need`

    return pl.pallas_call(
        _patch_embed_kernel,
        out_shape=jax.ShapeDtypeStruct((B, T, hidden), out_dtype),
        grid_spec=pltpu.PrefetchScalarGridSpec(
            num_scalar_prefetch=0,
            # batch axis innermost -> w/pos block indices constant across
            # consecutive steps (no per-batch re-fetch of weights/pos).
            grid=(n_tiles, n_bblocks),
            in_specs=[
                pl.BlockSpec((bb, T, K), lambda n, bi: (bi, 0, 0)),
                pl.BlockSpec((K, tn), lambda n, bi: (0, n)),
                pl.BlockSpec((T, tn), lambda n, bi: (0, n)),
            ],
            out_specs=pl.BlockSpec((bb, T, tn), lambda n, bi: (bi, 0, n)),
        ),
        compiler_params=pltpu.CompilerParams(
            dimension_semantics=("parallel", "parallel"),
            vmem_limit_bytes=vmem_limit,
        ),
    )(patches, w_mat, pos_full)


# --------------------------- parameter preparation ---------------------------
def prepare_embedding_params(params, patch_size, param_dtype=jnp.float32):
    """One-time preprocessing (hoisted off the serving path):
      * conv weight (O, C, P, P) -> (C*P*P, O) matmul layout,
      * conv bias folded into patch-row position embeddings (rows 1..),
      * cls token pre-summed with its position embedding and stored as row 0
        (the kernel's patches carry a zero row at token 0, so one fused add
        produces the cls row with no special-cased store)."""
    hidden, C, P, _ = params["conv_w"].shape
    K = C * P * P
    w_mat = jnp.transpose(params["conv_w"].reshape(hidden, K))          # (K, hidden)
    pos = params["pos_emb"][0]                                          # (T, hidden)
    pos_patch = pos[1:] + params["conv_b"][None, :]
    pos_cls = (params["cls_token"][0, 0] + pos[0])[None, :]
    pos_full = jnp.concatenate([pos_cls, pos_patch], axis=0)            # (T, hidden)
    return {"w_mat": w_mat.astype(param_dtype),
            "pos_full": pos_full.astype(param_dtype),
            "struc_token": params["struc_token"]}


# ------------------------------ forward wrapper -------------------------------
def embeddings_forward(x, prep, patch_size, *, compute_dtype=None, out_dtype=None):
    """Reproduces Embeddings.forward (non-overlap split, inference mode:
    dropout == identity).

    x: (B, C, H, W) float32 (NCHW, same as PyTorch)
    returns (embeddings (B, n_patches+1, hidden), struc_tokens (B, 1, hidden))
    """
    B, C, H, W = x.shape
    P = patch_size
    Hp, Wp = H // P, W // P
    n_patches = Hp * Wp
    hidden = prep["w_mat"].shape[1]
    out_dtype = out_dtype or x.dtype

    w_mat = prep["w_mat"]
    pos_full = prep["pos_full"]
    if compute_dtype is not None:            # e.g. jnp.bfloat16 on v6e/v7x
        x = x.astype(compute_dtype)          # cast BEFORE im2col so the patch
        w_mat = w_mat.astype(compute_dtype)  # buffer is written at half width
        pos_full = pos_full.astype(compute_dtype)

    # --- glue: non-overlapping patch extraction (im2col) + zero cls row at token 0
    # conv out[b,o,i,j] = sum_{c,ki,kj} x[b,c,i*P+ki,j*P+kj] * W[o,c,ki,kj]
    # TODO(synk): fuse this NCHW patch gather into the kernel's DMA side
    # (strided make_async_copy per patch row) to remove this extra HBM pass over x.
    patches = x.reshape(B, C, Hp, P, Wp, P)
    patches = jnp.transpose(patches, (0, 2, 4, 1, 3, 5)).reshape(B, n_patches, C * P * P)
    patches = jnp.pad(patches, ((0, 0), (1, 0), (0, 0)))   # zero row -> cls token slot

    # --- hot path: matmul + fused (bias + position + cls) add, in Pallas
    embeddings = patch_embed_pallas(patches, w_mat, pos_full, out_dtype=out_dtype)

    # dropout: inference mode -> identity
    struc_tokens = jnp.broadcast_to(prep["struc_token"].astype(out_dtype),
                                    (B, 1, hidden))
    return embeddings, struc_tokens


# ------------------------------ reference (JAX) -------------------------------
def embeddings_forward_ref(x, params, patch_size):
    B, C, H, W = x.shape
    hidden = params["conv_w"].shape[0]
    out = jax.lax.conv_general_dilated(
        x, params["conv_w"], window_strides=(patch_size, patch_size),
        padding="VALID", dimension_numbers=("NCHW", "OIHW", "NCHW"))
    out = out + params["conv_b"].reshape(1, hidden, 1, 1)
    out = out.reshape(B, hidden, -1).transpose(0, 2, 1)          # (B, n_patches, hidden)
    cls = jnp.broadcast_to(params["cls_token"], (B, 1, hidden))
    out = jnp.concatenate([cls, out], axis=1) + params["pos_emb"]
    struc = jnp.broadcast_to(params["struc_token"], (B, 1, hidden))
    return out, struc


# ---------------------------------- main --------------------------------------
if __name__ == "__main__":
    # Small config consistent with the module: img 16x16, patch 4, hidden 32.
    B, C_in, IMG, PATCH, HIDDEN = 2, 3, 16, 4, 32
    n_patches = (IMG // PATCH) * (IMG // PATCH)

    key = jax.random.PRNGKey(0)
    k_x, k_w, k_b, k_pos, k_cls, k_struc = jax.random.split(key, 6)

    x = jax.random.normal(k_x, (B, C_in, IMG, IMG), dtype=jnp.float32)

    params = {
        # Conv2d(in_channels, hidden, kernel=patch, stride=patch): weight (O,I,kh,kw)
        "conv_w": jax.random.normal(k_w, (HIDDEN, C_in, PATCH, PATCH),
                                    dtype=jnp.float32) * 0.02,
        "conv_b": jax.random.normal(k_b, (HIDDEN,), dtype=jnp.float32) * 0.02,
        # nn.Parameter(torch.zeros(...)) in the module; random here so the
        # position-add path is actually exercised.
        "pos_emb": jax.random.normal(k_pos, (1, n_patches + 1, HIDDEN),
                                     dtype=jnp.float32) * 0.02,
        "cls_token": jax.random.normal(k_cls, (1, 1, HIDDEN),
                                       dtype=jnp.float32) * 0.02,
        "struc_token": jax.random.normal(k_struc, (1, 1, HIDDEN),
                                         dtype=jnp.float32) * 0.02,
    }

    prep = prepare_embedding_params(params, PATCH)           # one-time prep
    fwd = jax.jit(functools.partial(embeddings_forward, patch_size=PATCH))

    emb, struc = fwd(x, prep)
    emb = jax.block_until_ready(emb)
    struc = jax.block_until_ready(struc)

    # correctness check against a pure-JAX reference of the PyTorch forward
    emb_ref, struc_ref = embeddings_forward_ref(x, params, PATCH)
    assert emb.shape == (B, n_patches + 1, HIDDEN)
    assert struc.shape == (B, 1, HIDDEN)
    assert jnp.allclose(emb, emb_ref, atol=1e-5, rtol=1e-5)
    assert jnp.allclose(struc, struc_ref, atol=1e-6, rtol=1e-6)

    # bf16 HBM-stream variant (perf default on mem-bound v6e/v7x when the
    # downstream tolerates it); accumulation and pos add stay in f32.
    fwd_bf16 = jax.jit(functools.partial(embeddings_forward, patch_size=PATCH,
                                         compute_dtype=jnp.bfloat16,
                                         out_dtype=jnp.float32))
    emb_bf16, _ = fwd_bf16(x, prep)
    emb_bf16 = jax.block_until_ready(emb_bf16)
    assert jnp.allclose(emb_bf16, emb_ref, atol=3e-2, rtol=3e-2)

    # TODO(synk): RelativeCoordPredictor / struct_head are only used in
    # get_attn(), not in forward(), so they are not implemented here.
    print("KERNEL_OK")
</pallas_src>

<mosaic_0001>
module attributes {stable_mosaic.version = 11 : i64} {
  func.func @_patch_embed_kernel(%arg0: i32, %arg1: i32, %arg2: memref<1x17x48xf32, #tpu.memory_space<vmem>>, %arg3: memref<48x32xf32, #tpu.memory_space<vmem>>, %arg4: memref<17x32xf32, #tpu.memory_space<vmem>>, %arg5: memref<1x17x32xf32, #tpu.memory_space<vmem>>) attributes {dimension_semantics = [#tpu.dimension_semantics<parallel>, #tpu.dimension_semantics<parallel>], iteration_bounds = array<i64: 1, 2>, scalar_prefetch = 0 : i64, scratch_operands = 0 : i64, tpu.core_type = #tpu.core_type<tc>, window_params = [{transform_indices = @transform_0, window_bounds = array<i64: 1, 17, 48>}, {transform_indices = @transform_1, window_bounds = array<i64: 48, 32>}, {transform_indices = @transform_2, window_bounds = array<i64: 17, 32>}, {transform_indices = @transform_3, window_bounds = array<i64: 1, 17, 32>}]} {
    %c0 = arith.constant 0 : index
    %c0_0 = arith.constant 0 : index
    %0 = vector.load %arg3[%c0, %c0_0] : memref<48x32xf32, #tpu.memory_space<vmem>>, vector<48x32xf32>
    %c0_1 = arith.constant 0 : index
    %c0_2 = arith.constant 0 : index
    %1 = vector.load %arg4[%c0_1, %c0_2] : memref<17x32xf32, #tpu.memory_space<vmem>>, vector<17x32xf32>
    %c0_3 = arith.constant 0 : index
    %c0_4 = arith.constant 0 : index
    %c0_5 = arith.constant 0 : index
    %2 = vector.load %arg2[%c0_3, %c0_4, %c0_5] : memref<1x17x48xf32, #tpu.memory_space<vmem>>, vector<1x17x48xf32>
    %3 = vector.shape_cast %2 : vector<1x17x48xf32> to vector<17x48xf32>
    %cst = arith.constant dense<0.000000e+00> : vector<17x32xf32>
    %4 = tpu.matmul %3, %0, %cst {dimension_numbers = #tpu.dot_dimension_numbers<[1], [0], [0], [1], [0, 0, 1, 1], [], []>} : vector<17x48xf32>, vector<48x32xf32>, vector<17x32xf32> -> vector<17x32xf32>
    %5 = arith.addf %4, %1 : vector<17x32xf32>
    %c0_6 = arith.constant 0 : index
    %c0_7 = arith.constant 0 : index
    %c0_8 = arith.constant 0 : index
    %6 = vector.load %arg5[%c0_6, %c0_7, %c0_8] : memref<1x17x32xf32, #tpu.memory_space<vmem>>, vector<1x17x32xf32>
    %7 = vector.shape_cast %6 : vector<1x17x32xf32> to vector<17x32xf32>
    %8 = vector.shape_cast %5 : vector<17x32xf32> to vector<1x17x32xf32>
    tpu.vector_store %arg5[%c0_6, %c0_7, %c0_8], %8 {strides = array<i32>} : memref<1x17x32xf32, #tpu.memory_space<vmem>>, vector<1x17x32xf32>,
    return
  }
  func.func @transform_0(%arg0: i32, %arg1: i32) -> (i32, i32, i32) {
    %c0_i32 = arith.constant 0 : i32
    %c0_i32_0 = arith.constant 0 : i32
    %c0_i32_1 = arith.constant 0 : i32
    return %arg1, %c0_i32, %c0_i32_0 : i32, i32, i32
  }
  func.func @transform_1(%arg0: i32, %arg1: i32) -> (i32, i32) {
    %c0_i32 = arith.constant 0 : i32
    %c0_i32_0 = arith.constant 0 : i32
    return %c0_i32, %arg0 : i32, i32
  }
  func.func @transform_2(%arg0: i32, %arg1: i32) -> (i32, i32) {
    %c0_i32 = arith.constant 0 : i32
    %c0_i32_0 = arith.constant 0 : i32
    return %c0_i32, %arg0 : i32, i32
  }
  func.func @transform_3(%arg0: i32, %arg1: i32) -> (i32, i32, i32) {
    %c0_i32 = arith.constant 0 : i32
    %c0_i32_0 = arith.constant 0 : i32
    return %arg1, %c0_i32, %arg0 : i32, i32, i32
  }
}

</mosaic_0001>

<llo_original>
// kernel: embeddings_forward.1
$region0: #{embeddings_forward.1}
  #allocation0 [shape = 'u32[]', space=smem, size = 0x4, offset = 0x4, fixed_abs, tag = 'smem constant byte address 0x4 - core index']
  #allocation1 [shape = 'u32[144,128]{1,0:T(1,128)}', space=vmem, size = 0x12000, scoped, tag = 'internal scratch']
  %s0 = inlined_call_operand.vmem [shape: f32[2,17,48], index: 0, kind: input, shape index: {}]
  %s1 = inlined_call_operand.vmem [shape: f32[48,32], index: 1, kind: input, shape index: {}]
  %s2 = inlined_call_operand.vmem [shape: f32[17,32], index: 2, kind: input, shape index: {}]
  %s3 = inlined_call_operand.vmem [shape: f32[2,17,32], index: 3, kind: output, shape index: {}]
  %s4 = sld [smem:[#allocation0]]
  $region45: #{embeddings_forward.1} parent=0
    _
  %s6 = ssub.s32 1, %s4
  %s7 = scalar_select 0, %s6, %s4
  loop: start=0, step=1, limit=4
  $region2: #{embeddings_forward.1} parent=0 // loop_pre_header
    _
  $region3: #{embeddings_forward.1} parent=0 // loop_header
    %s9 = sphi 0, %s13
    %p10 = scmp.ge.s32.totalorder %s9, 4
    %s16 = sphi 0, %s28
    %s17 = sphi 0, %s24
    %s18 = sphi 0, %s16
    %s19 = sphi 0, %s17
    %s20 = sphi 0, %s18
    %s21 = sphi 0, %s19
    %s31 = sphi 0, %s33
    %s34 = sphi 0, %s31
    %s35 = sphi 0, %s34
    %s51 = sphi 0, %s35
    %s57 = sphi 0, %s59
    %s60 = sphi 0, %s57
    %s61 = sphi 0, %s60
    %s77 = sphi 0, %s61
    %s83 = sphi 0, %s85
    %s86 = sphi 0, %s83
    %s87 = sphi 0, %s86
    %s103 = sphi 0, %s87
    %s111 = sphi 0, %s113
    %s114 = sphi 0, %s111
    %s115 = sphi 0, %s114
    %s131 = sphi 0, %s115
  $region4: #{embeddings_forward.1} parent=0 // loop_header_branch
    %12 = sbr.rel (%p10) target = $region8
  $region5: #{embeddings_forward.1} parent=0 // loop_body
    %s14 = ssub.s32 %s9, 1
    %s15 = ssub.s32 %s9, 2
    %s22 = sadd.s32 1, %s17
    %p23 = scmp.ge.s32.totalorder %s22, 2
    %s24 = scalar_select %p23, 0, %s22
    %s25 = sadd.s32 1, %s16
    %s26 = scalar_select %p23, %s25, %s16
    %p27 = scmp.ge.s32.totalorder %s26, 1
    %s28 = scalar_select %p27, 0, %s26
    %s29 = ssub.s32 %s17, %s24
    %p30 = scmp.eq.s32.totalorder %s29, 0
    %s32 = sadd.s32 %s31, 1
    %s33 = scalar_select %p30, %s31, %s32
    %p36 = pneg %p30
    %p37 = scmp.eq.s32.totalorder %s9, 1
    %p38 = por %p36, %p37
    %p39 = scmp.ne.s32.totalorder %s31, %s34
    %p40 = scmp.eq.s32.totalorder %s9, 0
    %p41 = por %p39, %p40
    %p42 = scmp.ne.s32.totalorder %s31, %s34
    %p43 = scmp.eq.s32.totalorder %s14, 1
    %p44 = por %p42, %p43
    %p45 = scmp.ne.s32.totalorder %s34, %s35
    %p46 = scmp.eq.s32.totalorder %s14, 0
    %p47 = por %p45, %p46
    %p48 = scmp.ne.s32.totalorder %s34, %s35
    %p49 = scmp.eq.s32.totalorder %s15, 1
    %p50 = por %p48, %p49
    %p52 = scmp.ne.s32.totalorder %s35, %s51
    %p53 = scmp.eq.s32.totalorder %s15, 0
    %p54 = por %p52, %p53
    %s55 = ssub.s32 %s16, %s28
    %p56 = scmp.eq.s32.totalorder %s55, 0
    %s58 = sadd.s32 %s57, 1
    %s59 = scalar_select %p56, %s57, %s58
    %p62 = pneg %p56
    %p63 = scmp.eq.s32.totalorder %s9, 1
    %p64 = por %p62, %p63
    %p65 = scmp.ne.s32.totalorder %s57, %s60
    %p66 = scmp.eq.s32.totalorder %s9, 0
    %p67 = por %p65, %p66
    %p68 = scmp.ne.s32.totalorder %s57, %s60
    %p69 = scmp.eq.s32.totalorder %s14, 1
    %p70 = por %p68, %p69
    %p71 = scmp.ne.s32.totalorder %s60, %s61
    %p72 = scmp.eq.s32.totalorder %s14, 0
    %p73 = por %p71, %p72
    %p74 = scmp.ne.s32.totalorder %s60, %s61
    %p75 = scmp.eq.s32.totalorder %s15, 1
    %p76 = por %p74, %p75
    %p78 = scmp.ne.s32.totalorder %s61, %s77
    %p79 = scmp.eq.s32.totalorder %s15, 0
    %p80 = por %p78, %p79
    %s81 = ssub.s32 %s16, %s28
    %p82 = scmp.eq.s32.totalorder %s81, 0
    %s84 = sadd.s32 %s83, 1
    %s85 = scalar_select %p82, %s83, %s84
    %p88 = pneg %p82
    %p89 = scmp.eq.s32.totalorder %s9, 1
    %p90 = por %p88, %p89
    %p91 = scmp.ne.s32.totalorder %s83, %s86
    %p92 = scmp.eq.s32.totalorder %s9, 0
    %p93 = por %p91, %p92
    %p94 = scmp.ne.s32.totalorder %s83, %s86
    %p95 = scmp.eq.s32.totalorder %s14, 1
    %p96 = por %p94, %p95
    %p97 = scmp.ne.s32.totalorder %s86, %s87
    %p98 = scmp.eq.s32.totalorder %s14, 0
    %p99 = por %p97, %p98
    %p100 = scmp.ne.s32.totalorder %s86, %s87
    %p101 = scmp.eq.s32.totalorder %s15, 1
    %p102 = por %p100, %p101
    %p104 = scmp.ne.s32.totalorder %s87, %s103
    %p105 = scmp.eq.s32.totalorder %s15, 0
    %p106 = por %p104, %p105
    %s107 = ssub.s32 %s17, %s24
    %s108 = ssub.s32 %s16, %s28
    %s109 = sor.u32 %s107, %s108
    %p110 = scmp.eq.s32.totalorder %s109, 0
    %s112 = sadd.s32 %s111, 1
    %s113 = scalar_select %p110, %s111, %s112
    %p116 = pneg %p110
    %p117 = scmp.eq.s32.totalorder %s9, 1
    %p118 = por %p116, %p117
    %p119 = scmp.ne.s32.totalorder %s111, %s114
    %p120 = scmp.eq.s32.totalorder %s9, 0
    %p121 = por %p119, %p120
    %p122 = scmp.ne.s32.totalorder %s111, %s114
    %p123 = scmp.eq.s32.totalorder %s14, 1
    %p124 = por %p122, %p123
    %p125 = scmp.ne.s32.totalorder %s114, %s115
    %p126 = scmp.eq.s32.totalorder %s14, 0
    %p127 = por %p125, %p126
    %p128 = scmp.ne.s32.totalorder %s114, %s115
    %p129 = scmp.eq.s32.totalorder %s15, 1
    %p130 = por %p128, %p129
    %p132 = scmp.ne.s32.totalorder %s115, %s131
    %p133 = scmp.eq.s32.totalorder %s15, 0
    %p134 = por %p132, %p133
    %p135 = scmp.le.s32.totalorder 1, %s9
    %p136 = scmp.lt.s32.totalorder %s9, 3
    %p137 = pnand %p135, %p136
    %p138 = pneg %p137
    // Predicated region
    $region9: #{embeddings_forward.1} parent=5 // pred_check
      _
    $region10: #{embeddings_forward.1} parent=5 // pred_check_branch
      %140 = sbr.rel (%p137) target = $region12
    $region11: #{embeddings_forward.1} parent=5 // pred_region
      %s141 = ssub.s32 %s9, 1
      // Predicated region
      $region13: #{embeddings_forward.1} parent=11 // pred_check
        %p142 = pneg %p73
      $region14: #{embeddings_forward.1} parent=11 // pred_check_branch
        %144 = sbr.rel (%p142) target = $region16
      $region15: #{embeddings_forward.1} parent=11 // pred_region
        %p145 = scmp.lt.s32.totalorder %s18, 0
        %s146 = scalar_select %p145, %s18, 0
        %s147 = smul.addr %s146, 8
        %s148 = scalar_lea.vmem %s1, %s147
      $region16: #{embeddings_forward.1} parent=11 // pred_fallthru
        _
      // Predicated region
      $region17: #{embeddings_forward.1} parent=11 // pred_check
        %p149 = pneg %p99
      $region18: #{embeddings_forward.1} parent=11 // pred_check_branch
        %151 = sbr.rel (%p149) target = $region20
      $region19: #{embeddings_forward.1} parent=11 // pred_region
        %p152 = scmp.lt.s32.totalorder %s18, 0
        %s153 = scalar_select %p152, %s18, 0
        %s154 = smul.addr %s153, 8
        %s155 = scalar_lea.vmem %s2, %s154
      $region20: #{embeddings_forward.1} parent=11 // pred_fallthru
        _
    $region12: #{embeddings_forward.1} parent=5 // pred_fallthru
      _
    %p156 = scmp.lt.s32.totalorder %s9, 2
    // Predicated region
    $region21: #{embeddings_forward.1} parent=5 // pred_check
      %p157 = pneg %p156
    $region22: #{embeddings_forward.1} parent=5 // pred_check_branch
      %159 = sbr.rel (%p157) target = $region24
    $region23: #{embeddings_forward.1} parent=5 // pred_region
      // Predicated region
      $region25: #{embeddings_forward.1} parent=23 // pred_check
        %p160 = pneg %p41
      $region26: #{embeddings_forward.1} parent=23 // pred_check_branch
        %162 = sbr.rel (%p160) target = $region28
      $region27: #{embeddings_forward.1} parent=23 // pred_region
        %p163 = scmp.lt.s32.totalorder %s17, 1
        %s164 = scalar_select %p163, %s17, 1
        %s165 = smul.addr %s164, 3
        %s166 = smul.addr %s165, 8
        %s167 = scalar_lea.vmem %s0, %s166
      $region28: #{embeddings_forward.1} parent=23 // pred_fallthru
        _
    $region24: #{embeddings_forward.1} parent=5 // pred_fallthru
      _
    %p168 = scmp.le.s32.totalorder 1, %s9
    %p169 = scmp.lt.s32.totalorder %s9, 3
    %p170 = pnand %p168, %p169
    %p171 = pneg %p170
    // Predicated region
    $region29: #{embeddings_forward.1} parent=5 // pred_check
      _
    $region30: #{embeddings_forward.1} parent=5 // pred_check_branch
      %173 = sbr.rel (%p170) target = $region32
    $region31: #{embeddings_forward.1} parent=5 // pred_region
      %s174 = ssub.s32 %s9, 1
      %p175 = scmp.lt.s32.totalorder %s19, 1
      %s176 = scalar_select %p175, %s19, 1
      %s177 = smul.addr %s176, 3
      %s178 = smul.addr %s177, 8
      %s179 = scalar_lea.vmem %s0, %s178
      %p180 = pneg %p47
      %p181 = pneg %p44
      %p182 = scmp.lt.s32.totalorder %s18, 0
      %s183 = scalar_select %p182, %s18, 0
      %s184 = smul.addr %s183, 8
      %s185 = scalar_lea.vmem %s1, %s184
      %p186 = pneg %p73
      %p187 = pneg %p70
      %p188 = scmp.lt.s32.totalorder %s18, 0
      %s189 = scalar_select %p188, %s18, 0
      %s190 = smul.addr %s189, 8
      %s191 = scalar_lea.vmem %s2, %s190
      %p192 = pneg %p99
      %p193 = pneg %p96
      %p194 = pneg %p127
      %p195 = pneg %p124
      %p196 = scmp.lt.s32.totalorder %s19, 1
      %s197 = scalar_select %p196, %s19, 1
      %p198 = scmp.lt.s32.totalorder %s18, 0
      %s199 = scalar_select %p198, %s18, 0
      %s200 = smul.addr %s197, 3
      %s201 = sadd.s32 %s199, %s200
      %s202 = smul.addr %s201, 8
      %s203 = scalar_lea.vmem %s3, %s202
      %p204 = scmp.lt.s32.totalorder %s19, 1
      %s205 = scalar_select %p204, %s19, 1
      %s206 = smul.addr %s205, 3
      %s207 = smul.addr %s206, 8
      %s208 = scalar_lea.vmem %s0, %s207
      %p209 = scmp.lt.s32.totalorder %s18, 0
      %s210 = scalar_select %p209, %s18, 0
      %s211 = smul.addr %s210, 8
      %s212 = scalar_lea.vmem %s1, %s211
      %p213 = scmp.lt.s32.totalorder %s18, 0
      %s214 = scalar_select %p213, %s18, 0
      %s215 = smul.addr %s214, 8
      %s216 = scalar_lea.vmem %s2, %s215
      %p217 = scmp.lt.s32.totalorder %s19, 1
      %s218 = scalar_select %p217, %s19, 1
      %p219 = scmp.lt.s32.totalorder %s18, 0
      %s220 = scalar_select %p219, %s18, 0
      %s221 = smul.addr %s218, 3
      %s222 = sadd.s32 %s220, %s221
      %s223 = smul.addr %s222, 8
      %s224 = scalar_lea.vmem %s3, %s223
      %v225 = vld [vmem:[%s212] sm:$0xff]
      %v226 = vld [vmem:[%s212 + $0x8] sm:$0xff]
      %v227 = vld [vmem:[%s212 + $0x10] sm:$0xff]
      %v228 = vld [vmem:[%s212 + $0x18] sm:$0xff]
      %v229 = vld [vmem:[%s212 + $0x20] sm:$0xff]
      %v230 = vld [vmem:[%s212 + $0x28] sm:$0xff]
      %v231 = vld [vmem:[%s216] sm:$0xff]
      %v232 = vld [vmem:[%s216 + $0x8] sm:$0xff]
      %v233 = vld [vmem:[%s216 + $0x10] sm:$0x1]
      %v234 = vld [vmem:[%s208] sm:$0xff]
      %v235 = vld [vmem:[%s208 + $0x8] sm:$0xff]
      %v236 = vld [vmem:[%s208 + $0x10] sm:$0x1]
      %vm237 = vcmask 392192
      %v239 = vsel %vm237, %v234, 0
      %v242 = vsel %vm237, %v235, 0
      %v245 = vsel %vm237, %v236, 0
      %247 = vmatprep.subr.mxu0 0.0
      %248 = vmatpush1.msra.mxu0 %v225
      %249 = vmatprep.subr.mxu0 0.0
      %250 = vmatpush1.msra.mxu0 %v226
      %251 = vmatprep.subr.mxu0 0.0
      %252 = vmatpush1.msra.mxu0 %v227
      %253 = vmatprep.subr.mxu0 0.0
      %254 = vmatpush1.msra.mxu0 %v228
      %255 = vmatprep.subr.mxu0 0.0
      %256 = vmatpush1.msra.mxu0 %v229
      %257 = vmatprep.subr.mxu0 0.0
      %258 = vmatpush1.msra.mxu0 %v230
      %259 = vmatprep.subr.mxu0 0.0
      %260 = vmatpush1.msra.mxu0 0.0
      %261 = vmatprep.subr.mxu0 0.0
      %262 = vmatpush1.msra.mxu0 0.0
      %263 = vmatprep.subr.mxu0 0.0
      %264 = vmatpush1.msra.mxu0 0.0
      %265 = vmatprep.subr.mxu0 0.0
      %266 = vmatpush1.msra.mxu0 0.0
      %267 = vmatprep.subr.mxu0 0.0
      %268 = vmatpush1.msra.mxu0 0.0
      %269 = vmatprep.subr.mxu0 0.0
      %270 = vmatpush1.msra.mxu0 0.0
      %271 = vmatprep.subr.mxu0 0.0
      %272 = vmatpush1.msra.mxu0 0.0
      %273 = vmatprep.subr.mxu0 0.0
      %274 = vmatpush1.msra.mxu0 0.0
      %275 = vmatprep.subr.mxu0 0.0
      %276 = vmatpush1.msra.mxu0 0.0
      %277 = vmatprep.subr.mxu0 0.0
      %278 = vmatpush1.msra.mxu0 0.0
      %279 = vmatprep.subr.mxu0 0.0
      %280 = vmatpush1.msra.mxu0 0.0
      %281 = vmatprep.subr.mxu0 0.0
      %282 = vmatpush1.msra.mxu0 0.0
      %283 = vmatprep.subr.mxu0 0.0
      %284 = vmatpush1.msra.mxu0 0.0
      %285 = vmatprep.subr.mxu0 0.0
      %286 = vmatpush1.msra.mxu0 0.0
      %287 = vmatprep.subr.mxu0 0.0
      %288 = vmatpush1.msra.mxu0 0.0
      %289 = vmatprep.subr.mxu0 0.0
      %290 = vmatpush1.msra.mxu0 0.0
      %291 = vmatprep.subr.mxu0 0.0
      %292 = vmatpush1.msra.mxu0 0.0
      %293 = vmatprep.subr.mxu0 0.0
      %294 = vmatpush1.msra.mxu0 0.0
      %295 = vmatprep.subr.mxu0 0.0
      %296 = vmatpush1.msra.mxu0 0.0
      %297 = vmatprep.subr.mxu0 0.0
      %298 = vmatpush1.msra.mxu0 0.0
      %299 = vmatprep.subr.mxu0 0.0
      %300 = vmatpush1.msra.mxu0 0.0
      %301 = vmatprep.subr.mxu0 0.0
      %302 = vmatpush1.msra.mxu0 0.0
      %303 = vmatprep.subr.mxu0 0.0
      %304 = vmatpush1.msra.mxu0 0.0
      %305 = vmatprep.subr.mxu0 0.0
      %306 = vmatpush1.msra.mxu0 0.0
      %307 = vmatprep.subr.mxu0 0.0
      %308 = vmatpush1.msra.mxu0 0.0
      %309 = vmatprep.subr.mxu0 0.0
      %310 = vmatpush1.msra.mxu0 0.0
      %311 = vmatprep.mubr.f32.mxu0 0.0
      %312 = vmatmul.mubr.f32.gmra.mrb[0].mxu0 %v239
      %v313 = vpop.f32.mrb[0].mxu0
      %v314 = vadd.f32 %v231, %v313
      %v315 = vpop.f32.mrb[0].mxu0
      %316 = vmatprep.mubr.f32.mxu0 0.0
      %317 = vmatmul.mubr.f32.gmra.mrb[0].mxu0 %v242
      %v318 = vpop.f32.mrb[0].mxu0
      %v319 = vadd.f32 %v232, %v318
      %v320 = vpop.f32.mrb[0].mxu0
      %321 = vmatprep.mubr.f32.mxu0 0.0
      %322 = vmatmul.mubr.f32.gmra.mrb[0].mxu0 %v245
      %v323 = vpop.f32.mrb[0].mxu0
      %v324 = vadd.f32 %v233, %v323
      %v325 = vpop.f32.mrb[0].mxu0
      %326 = vdwg.mxu0
      %vm327 = vcmask 261120
      %328 = vst.msk [vmem:[%s224] sm:$0xff] %vm327, %v314
      %329 = vst.msk [vmem:[%s224 + $0x8] sm:$0xff] %vm327, %v319
      %vm330 = vcmask 253952
      %331 = vst.msk [vmem:[%s224 + $0x10] sm:$0x1] %vm330, %v324
      %p332 = scmp.lt.s32.totalorder %s19, 1
      %s333 = scalar_select %p332, %s19, 1
      %p334 = scmp.lt.s32.totalorder %s18, 0
      %s335 = scalar_select %p334, %s18, 0
      %s336 = smul.addr %s333, 3
      %s337 = sadd.s32 %s335, %s336
      %s338 = smul.addr %s337, 8
      %s339 = scalar_lea.vmem %s3, %s338
      // Predicated region
      $region33: #{embeddings_forward.1} parent=31 // pred_check
        %p340 = pneg %p124
      $region34: #{embeddings_forward.1} parent=31 // pred_check_branch
        %342 = sbr.rel (%p340) target = $region36
      $region35: #{embeddings_forward.1} parent=31 // pred_region
        _
      $region36: #{embeddings_forward.1} parent=31 // pred_fallthru
        _
    $region32: #{embeddings_forward.1} parent=5 // pred_fallthru
      _
    %p343 = scmp.le.s32.totalorder 2, %s9
    // Predicated region
    $region37: #{embeddings_forward.1} parent=5 // pred_check
      %p344 = pneg %p343
    $region38: #{embeddings_forward.1} parent=5 // pred_check_branch
      %346 = sbr.rel (%p344) target = $region40
    $region39: #{embeddings_forward.1} parent=5 // pred_region
      %s347 = ssub.s32 %s9, 2
      // Predicated region
      $region41: #{embeddings_forward.1} parent=39 // pred_check
        %p348 = pneg %p130
      $region42: #{embeddings_forward.1} parent=39 // pred_check_branch
        %350 = sbr.rel (%p348) target = $region44
      $region43: #{embeddings_forward.1} parent=39 // pred_region
        %p351 = scmp.lt.s32.totalorder %s21, 1
        %s352 = scalar_select %p351, %s21, 1
        %p353 = scmp.lt.s32.totalorder %s20, 0
        %s354 = scalar_select %p353, %s20, 0
        %s355 = smul.addr %s352, 3
        %s356 = sadd.s32 %s354, %s355
        %s357 = smul.addr %s356, 8
        %s358 = scalar_lea.vmem %s3, %s357
      $region44: #{embeddings_forward.1} parent=39 // pred_fallthru
        _
    $region40: #{embeddings_forward.1} parent=5 // pred_fallthru
      _
  $region6: #{embeddings_forward.1} parent=0 // loop_footer
    %s13 = sadd.s32 1, %s9
  $region7: #{embeddings_forward.1} parent=0 // loop_footer_branch
    %8 = sbr.rel target = $region3
  $region8: #{embeddings_forward.1} parent=0 // loop_exit
    _

</llo_original>
